<compile_context>
chip_gen: v5e
topology: v5e:2x2
jax: 0.10.0
libtpu: 0.0.40
codegen_flags: <defaults>
</compile_context>

<pallas_src>
import functools
import math

import jax
import jax.numpy as jnp
import numpy as np
from jax import lax
from jax.experimental import pallas as pl
from jax.experimental.pallas import tpu as pltpu


# ----------------------------- Pallas kernel -------------------------------

def _bottleneck_kernel(x_ref, mask_ref,
                       w1_ref, s1_ref, b1_ref,
                       w2_ref, s2_ref, b2_ref,
                       w3_ref, s3_ref, b3_ref,
                       o_ref, *, W, L, compute_dtype):
    """One grid step = B_TILE whole images packed into the lane axis.

    All tiles are channel-first (C, L) with L = B_TILE*H*W a multiple of 128.
    """
    x = x_ref[...]                                 # (Cin, L) f32 (residual)
    xc = x.astype(compute_dtype)
    masks = mask_ref[...]                          # (9, L) f32 0/1 border masks

    # ---- conv1 (1x1) + bn1 + relu  (BN scale/bias applied in f32 epilogue) ----
    y1 = jnp.dot(w1_ref[...], xc, preferred_element_type=jnp.float32)
    y1 = jnp.maximum(y1 * s1_ref[...] + b1_ref[...], 0.0)        # (P, L) f32

    # ---- conv2 (3x3, pad 1): in-register (9P, L) patch slab via XLU lane rolls.
    # Flat roll may pull from a neighboring image in the packed lane axis, but any
    # such position is exactly where the zero-padding mask is 0, so it is correct.
    pieces = []
    k = 0
    for dh in (-1, 0, 1):
        for dw in (-1, 0, 1):
            d = dh * W + dw                        # flat spatial shift
            shifted = y1 if d == 0 else pltpu.roll(y1, shift=(-d) % L, axis=1)
            pieces.append(shifted * masks[k:k + 1, :])   # zero padding via const mask
            k += 1
    patches = jnp.concatenate(pieces, axis=0).astype(compute_dtype)  # (9P, L)

    y2 = jnp.dot(w2_ref[...], patches, preferred_element_type=jnp.float32)
    y2 = jnp.maximum(y2 * s2_ref[...] + b2_ref[...], 0.0)        # (P, L) f32

    # ---- conv3 (1x1) + bn3 + residual add + relu ----
    y3 = jnp.dot(w3_ref[...], y2.astype(compute_dtype),
                 preferred_element_type=jnp.float32)             # (Cout, L) f32
    o_ref[...] = jnp.maximum(y3 * s3_ref[...] + b3_ref[...] + x, 0.0).astype(o_ref.dtype)


# ------------------------------ JAX wrapper ---------------------------------

def fold_bn(gamma, beta, mean, var, eps=1e-5):
    scale = gamma / jnp.sqrt(var + eps)
    bias = beta - mean * scale
    return scale, bias


def _pick_batch_tile(N, HW):
    """Smallest image count per grid step that makes the lane width %128 == 0."""
    b = 128 // math.gcd(HW, 128)
    if b > N or N % b != 0:
        return N                          # fallback: whole batch in one step
    # Grow the lane tile toward ~512 lanes while it still evenly divides N.
    while N % (2 * b) == 0 and 2 * b * HW <= 512:
        b *= 2
    return b


def _border_masks(H, W, b_tile):
    """(9, b_tile*H*W) 0/1 masks implementing zero padding for the 3x3 taps."""
    HW = H * W
    L = b_tile * HW
    pos = np.arange(L)
    hh = (pos % HW) // W
    ww = pos % W
    rows = []
    for dh in (-1, 0, 1):
        for dw in (-1, 0, 1):
            valid = (hh + dh >= 0) & (hh + dh < H) & (ww + dw >= 0) & (ww + dw < W)
            rows.append(valid.astype(np.float32))
    return jnp.asarray(np.stack(rows, axis=0))


def bottleneck_disout_forward(x_nchw, params, stride=1, use_bf16=True):
    """Forward of Bottleneck_disout (eval mode, downsample=None) as one fused kernel."""
    N, Cin, H, W = x_nchw.shape
    planes = params["w1"].shape[0]
    Cout = planes * 4
    assert Cin == Cout and stride == 1, \
        "downsample=None path requires inplanes == planes*4 and stride == 1"
    HW = H * W
    wdt = jnp.bfloat16 if use_bf16 else jnp.float32

    B_TILE = _pick_batch_tile(N, HW)       # lane-dense: B_TILE*HW % 128 == 0 (here 128)
    L = B_TILE * HW

    s1, b1 = fold_bn(*params["bn1"])
    s2, b2 = fold_bn(*params["bn2"])
    s3, b3 = fold_bn(*params["bn3"])

    # Weights stay unscaled in bf16; per-channel BN scale stays exact f32 in epilogue.
    w1m = params["w1"].reshape(planes, Cin).astype(wdt)                        # (P, Cin)
    w2m = jnp.transpose(params["w2"], (0, 2, 3, 1)).reshape(planes, 9 * planes).astype(wdt)
    w3m = params["w3"].reshape(Cout, planes).astype(wdt)                       # (Cout, P)

    def col(v):
        return v.reshape(-1, 1).astype(jnp.float32)

    masks = _border_masks(H, W, B_TILE)

    # Lane-dense packing: NCHW -> (C, N*H*W). Cheap layout plumbing outside the kernel.
    x_packed = jnp.transpose(x_nchw, (1, 0, 2, 3)).reshape(Cin, N * HW)

    def const_spec(shape):
        # Constant index_map: block index never changes across grid steps, so Pallas
        # elides the per-step re-DMA -- effectively resident in VMEM after step 0.
        return pl.BlockSpec(shape, lambda n: (0,) * len(shape))

    kernel = functools.partial(_bottleneck_kernel, W=W, L=L, compute_dtype=wdt)

    flops = 2 * N * HW * (Cin * planes + 9 * planes * planes + planes * Cout)
    bytes_accessed = (N * HW * (Cin + Cout) * 4                     # x in + out (f32)
                      + 2 * (w1m.size + w2m.size + w3m.size)        # bf16 weights
                      + 4 * (masks.size + 2 * (2 * planes + Cout)))  # masks + scale/bias

    out = pl.pallas_call(
        kernel,
        out_shape=jax.ShapeDtypeStruct((Cout, N * HW), jnp.float32),
        grid=(N // B_TILE,),
        in_specs=[
            pl.BlockSpec((Cin, L), lambda n: (0, n)),      # x, lane-dense image group
            const_spec((9, L)),                            # border masks (resident)
            const_spec((planes, Cin)),                     # w1
            const_spec((planes, 1)), const_spec((planes, 1)),   # s1, b1
            const_spec((planes, 9 * planes)),              # w2
            const_spec((planes, 1)), const_spec((planes, 1)),   # s2, b2
            const_spec((Cout, planes)),                    # w3
            const_spec((Cout, 1)), const_spec((Cout, 1)),  # s3, b3
        ],
        out_specs=pl.BlockSpec((Cout, L), lambda n: (0, n)),
        compiler_params=pltpu.CompilerParams(
            dimension_semantics=("parallel",)),
        cost_estimate=pl.CostEstimate(flops=flops, transcendentals=0,
                                      bytes_accessed=bytes_accessed),
    )(x_packed, masks,
      w1m, col(s1), col(b1),
      w2m, col(s2), col(b2),
      w3m, col(s3), col(b3))

    return jnp.transpose(out.reshape(Cout, N, H, W), (1, 0, 2, 3))


# -------------------------- pure-JAX reference ------------------------------

def reference_forward(x, params, stride=1):
    def conv(x, w, stride, pad):
        return lax.conv_general_dilated(
            x, w, window_strides=(stride, stride), padding=[(pad, pad), (pad, pad)],
            dimension_numbers=("NCHW", "OIHW", "NCHW"))

    def bn(x, p):
        g, b, m, v = p
        s = g / jnp.sqrt(v + 1e-5)
        return x * s[None, :, None, None] + (b - m * s)[None, :, None, None]

    out = jax.nn.relu(bn(conv(x, params["w1"], 1, 0), params["bn1"]))
    out = jax.nn.relu(bn(conv(out, params["w2"], stride, 1), params["bn2"]))
    out = bn(conv(out, params["w3"], 1, 0), params["bn3"])
    return jax.nn.relu(out + x)


# --------------------------------- main --------------------------------------

if __name__ == "__main__":
    key = jax.random.PRNGKey(0)
    ks = jax.random.split(key, 16)

    # Module config: planes=8, inplanes=planes*expansion=32, stride=1, downsample=None.
    planes, inplanes = 8, 32
    N, H, W = 2, 8, 8          # N*H*W = 128 -> one lane-dense grid step

    def bn_params(k, c):
        k1, k2, k3, k4 = jax.random.split(k, 4)
        gamma = jax.random.uniform(k1, (c,), minval=0.5, maxval=1.5)
        beta = jax.random.normal(k2, (c,)) * 0.1
        mean = jax.random.normal(k3, (c,)) * 0.1
        var = jax.random.uniform(k4, (c,), minval=0.5, maxval=1.5)
        return (gamma, beta, mean, var)

    params = {
        "w1": jax.random.normal(ks[0], (planes, inplanes, 1, 1)) * 0.1,
        "w2": jax.random.normal(ks[1], (planes, planes, 3, 3)) * 0.1,
        "w3": jax.random.normal(ks[2], (planes * 4, planes, 1, 1)) * 0.1,
        "bn1": bn_params(ks[3], planes),
        "bn2": bn_params(ks[4], planes),
        "bn3": bn_params(ks[5], planes * 4),
    }

    x = jax.random.normal(ks[6], (N, inplanes, H, W), dtype=jnp.float32)

    out = jax.block_until_ready(bottleneck_disout_forward(x, params, stride=1))
    ref = jax.block_until_ready(reference_forward(x, params, stride=1))

    assert out.shape == (N, planes * 4, H, W), out.shape
    # bf16 MXU operands with f32 accumulation/epilogue -> loosened tolerance vs f32 ref.
    np.testing.assert_allclose(np.asarray(out), np.asarray(ref), atol=5e-2, rtol=5e-2)

    print("KERNEL_OK")
</pallas_src>

<mosaic_0001>
module attributes {stable_mosaic.version = 11 : i64} {
  func.func @_bottleneck_kernel(%arg0: i32, %arg1: memref<32x128xf32, #tpu.memory_space<vmem>>, %arg2: memref<9x128xf32, #tpu.memory_space<vmem>>, %arg3: memref<8x32xbf16, #tpu.memory_space<vmem>>, %arg4: memref<8x1xf32, #tpu.memory_space<vmem>>, %arg5: memref<8x1xf32, #tpu.memory_space<vmem>>, %arg6: memref<8x72xbf16, #tpu.memory_space<vmem>>, %arg7: memref<8x1xf32, #tpu.memory_space<vmem>>, %arg8: memref<8x1xf32, #tpu.memory_space<vmem>>, %arg9: memref<32x8xbf16, #tpu.memory_space<vmem>>, %arg10: memref<32x1xf32, #tpu.memory_space<vmem>>, %arg11: memref<32x1xf32, #tpu.memory_space<vmem>>, %arg12: memref<32x128xf32, #tpu.memory_space<vmem>>) attributes {dimension_semantics = [#tpu.dimension_semantics<parallel>], iteration_bounds = array<i64: 1>, scalar_prefetch = 0 : i64, scratch_operands = 0 : i64, tpu.core_type = #tpu.core_type<tc>, window_params = [{transform_indices = @transform_0, window_bounds = array<i64: 32, 128>}, {pipeline_mode = #tpu.pipeline_mode<synchronous>, transform_indices = @transform_1, window_bounds = array<i64: 9, 128>}, {pipeline_mode = #tpu.pipeline_mode<synchronous>, transform_indices = @transform_2, window_bounds = array<i64: 8, 32>}, {pipeline_mode = #tpu.pipeline_mode<synchronous>, transform_indices = @transform_3, window_bounds = array<i64: 8, 1>}, {pipeline_mode = #tpu.pipeline_mode<synchronous>, transform_indices = @transform_4, window_bounds = array<i64: 8, 1>}, {pipeline_mode = #tpu.pipeline_mode<synchronous>, transform_indices = @transform_5, window_bounds = array<i64: 8, 72>}, {pipeline_mode = #tpu.pipeline_mode<synchronous>, transform_indices = @transform_6, window_bounds = array<i64: 8, 1>}, {pipeline_mode = #tpu.pipeline_mode<synchronous>, transform_indices = @transform_7, window_bounds = array<i64: 8, 1>}, {pipeline_mode = #tpu.pipeline_mode<synchronous>, transform_indices = @transform_8, window_bounds = array<i64: 32, 8>}, {pipeline_mode = #tpu.pipeline_mode<synchronous>, transform_indices = @transform_9, window_bounds = array<i64: 32, 1>}, {pipeline_mode = #tpu.pipeline_mode<synchronous>, transform_indices = @transform_10, window_bounds = array<i64: 32, 1>}, {transform_indices = @transform_11, window_bounds = array<i64: 32, 128>}]} {
    %c0 = arith.constant 0 : index
    %c0_0 = arith.constant 0 : index
    %0 = vector.load %arg1[%c0, %c0_0] : memref<32x128xf32, #tpu.memory_space<vmem>>, vector<32x128xf32>
    %1 = arith.truncf %0 : vector<32x128xf32> to vector<32x128xbf16>
    %c0_1 = arith.constant 0 : index
    %c0_2 = arith.constant 0 : index
    %2 = vector.load %arg2[%c0_1, %c0_2] : memref<9x128xf32, #tpu.memory_space<vmem>>, vector<9x128xf32>
    %c0_3 = arith.constant 0 : index
    %c0_4 = arith.constant 0 : index
    %3 = vector.load %arg3[%c0_3, %c0_4] : memref<8x32xbf16, #tpu.memory_space<vmem>>, vector<8x32xbf16>
    %cst = arith.constant dense<0.000000e+00> : vector<8x128xf32>
    %4 = tpu.matmul %3, %1, %cst {dimension_numbers = #tpu.dot_dimension_numbers<[1], [0], [0], [1], [0, 0, 1, 1], [], []>} : vector<8x32xbf16>, vector<32x128xbf16>, vector<8x128xf32> -> vector<8x128xf32>
    %c0_5 = arith.constant 0 : index
    %c0_6 = arith.constant 0 : index
    %5 = vector.load %arg4[%c0_5, %c0_6] : memref<8x1xf32, #tpu.memory_space<vmem>>, vector<8x1xf32>
    %6 = vector.broadcast %5 : vector<8x1xf32> to vector<8x128xf32>
    %7 = arith.mulf %4, %6 : vector<8x128xf32>
    %c0_7 = arith.constant 0 : index
    %c0_8 = arith.constant 0 : index
    %8 = vector.load %arg5[%c0_7, %c0_8] : memref<8x1xf32, #tpu.memory_space<vmem>>, vector<8x1xf32>
    %9 = vector.broadcast %8 : vector<8x1xf32> to vector<8x128xf32>
    %10 = arith.addf %7, %9 : vector<8x128xf32>
    %cst_9 = arith.constant 0.000000e+00 : f32
    %11 = vector.broadcast %cst_9 : f32 to vector<8x128xf32>
    %12 = arith.maximumf %10, %11 : vector<8x128xf32>
    %c9_i32 = arith.constant 9 : i32
    %13 = tpu.dynamic_rotate %12 by %c9_i32 dim 1 : vector<8x128xf32>, i32 -> vector<8x128xf32>
    %14 = vector.extract_strided_slice %2 {offsets = [0, 0], sizes = [1, 128], strides = [1, 1]} : vector<9x128xf32> to vector<1x128xf32>
    %15 = vector.broadcast %14 : vector<1x128xf32> to vector<8x128xf32>
    %16 = arith.mulf %13, %15 : vector<8x128xf32>
    %c8_i32 = arith.constant 8 : i32
    %17 = tpu.dynamic_rotate %12 by %c8_i32 dim 1 : vector<8x128xf32>, i32 -> vector<8x128xf32>
    %18 = vector.extract_strided_slice %2 {offsets = [1, 0], sizes = [1, 128], strides = [1, 1]} : vector<9x128xf32> to vector<1x128xf32>
    %19 = vector.broadcast %18 : vector<1x128xf32> to vector<8x128xf32>
    %20 = arith.mulf %17, %19 : vector<8x128xf32>
    %c7_i32 = arith.constant 7 : i32
    %21 = tpu.dynamic_rotate %12 by %c7_i32 dim 1 : vector<8x128xf32>, i32 -> vector<8x128xf32>
    %22 = vector.extract_strided_slice %2 {offsets = [2, 0], sizes = [1, 128], strides = [1, 1]} : vector<9x128xf32> to vector<1x128xf32>
    %23 = vector.broadcast %22 : vector<1x128xf32> to vector<8x128xf32>
    %24 = arith.mulf %21, %23 : vector<8x128xf32>
    %c1_i32 = arith.constant 1 : i32
    %25 = tpu.dynamic_rotate %12 by %c1_i32 dim 1 : vector<8x128xf32>, i32 -> vector<8x128xf32>
    %26 = vector.extract_strided_slice %2 {offsets = [3, 0], sizes = [1, 128], strides = [1, 1]} : vector<9x128xf32> to vector<1x128xf32>
    %27 = vector.broadcast %26 : vector<1x128xf32> to vector<8x128xf32>
    %28 = arith.mulf %25, %27 : vector<8x128xf32>
    %29 = vector.extract_strided_slice %2 {offsets = [4, 0], sizes = [1, 128], strides = [1, 1]} : vector<9x128xf32> to vector<1x128xf32>
    %30 = vector.broadcast %29 : vector<1x128xf32> to vector<8x128xf32>
    %31 = arith.mulf %12, %30 : vector<8x128xf32>
    %c127_i32 = arith.constant 127 : i32
    %32 = tpu.dynamic_rotate %12 by %c127_i32 dim 1 : vector<8x128xf32>, i32 -> vector<8x128xf32>
    %33 = vector.extract_strided_slice %2 {offsets = [5, 0], sizes = [1, 128], strides = [1, 1]} : vector<9x128xf32> to vector<1x128xf32>
    %34 = vector.broadcast %33 : vector<1x128xf32> to vector<8x128xf32>
    %35 = arith.mulf %32, %34 : vector<8x128xf32>
    %c121_i32 = arith.constant 121 : i32
    %36 = tpu.dynamic_rotate %12 by %c121_i32 dim 1 : vector<8x128xf32>, i32 -> vector<8x128xf32>
    %37 = vector.extract_strided_slice %2 {offsets = [6, 0], sizes = [1, 128], strides = [1, 1]} : vector<9x128xf32> to vector<1x128xf32>
    %38 = vector.broadcast %37 : vector<1x128xf32> to vector<8x128xf32>
    %39 = arith.mulf %36, %38 : vector<8x128xf32>
    %c120_i32 = arith.constant 120 : i32
    %40 = tpu.dynamic_rotate %12 by %c120_i32 dim 1 : vector<8x128xf32>, i32 -> vector<8x128xf32>
    %41 = vector.extract_strided_slice %2 {offsets = [7, 0], sizes = [1, 128], strides = [1, 1]} : vector<9x128xf32> to vector<1x128xf32>
    %42 = vector.broadcast %41 : vector<1x128xf32> to vector<8x128xf32>
    %43 = arith.mulf %40, %42 : vector<8x128xf32>
    %c119_i32 = arith.constant 119 : i32
    %44 = tpu.dynamic_rotate %12 by %c119_i32 dim 1 : vector<8x128xf32>, i32 -> vector<8x128xf32>
    %45 = vector.extract_strided_slice %2 {offsets = [8, 0], sizes = [1, 128], strides = [1, 1]} : vector<9x128xf32> to vector<1x128xf32>
    %46 = vector.broadcast %45 : vector<1x128xf32> to vector<8x128xf32>
    %47 = arith.mulf %44, %46 : vector<8x128xf32>
    %48 = tpu.concatenate %16, %20, %24, %28, %31, %35, %39, %43, %47 in 0 : vector<8x128xf32>, vector<8x128xf32>, vector<8x128xf32>, vector<8x128xf32>, vector<8x128xf32>, vector<8x128xf32>, vector<8x128xf32>, vector<8x128xf32>, vector<8x128xf32> -> vector<72x128xf32>
    %49 = arith.truncf %48 : vector<72x128xf32> to vector<72x128xbf16>
    %c0_10 = arith.constant 0 : index
    %c0_11 = arith.constant 0 : index
    %50 = vector.load %arg6[%c0_10, %c0_11] : memref<8x72xbf16, #tpu.memory_space<vmem>>, vector<8x72xbf16>
    %cst_12 = arith.constant dense<0.000000e+00> : vector<8x128xf32>
    %51 = tpu.matmul %50, %49, %cst_12 {dimension_numbers = #tpu.dot_dimension_numbers<[1], [0], [0], [1], [0, 0, 1, 1], [], []>} : vector<8x72xbf16>, vector<72x128xbf16>, vector<8x128xf32> -> vector<8x128xf32>
    %c0_13 = arith.constant 0 : index
    %c0_14 = arith.constant 0 : index
    %52 = vector.load %arg7[%c0_13, %c0_14] : memref<8x1xf32, #tpu.memory_space<vmem>>, vector<8x1xf32>
    %53 = vector.broadcast %52 : vector<8x1xf32> to vector<8x128xf32>
    %54 = arith.mulf %51, %53 : vector<8x128xf32>
    %c0_15 = arith.constant 0 : index
    %c0_16 = arith.constant 0 : index
    %55 = vector.load %arg8[%c0_15, %c0_16] : memref<8x1xf32, #tpu.memory_space<vmem>>, vector<8x1xf32>
    %56 = vector.broadcast %55 : vector<8x1xf32> to vector<8x128xf32>
    %57 = arith.addf %54, %56 : vector<8x128xf32>
    %cst_17 = arith.constant 0.000000e+00 : f32
    %58 = vector.broadcast %cst_17 : f32 to vector<8x128xf32>
    %59 = arith.maximumf %57, %58 : vector<8x128xf32>
    %c0_18 = arith.constant 0 : index
    %c0_19 = arith.constant 0 : index
    %60 = vector.load %arg9[%c0_18, %c0_19] : memref<32x8xbf16, #tpu.memory_space<vmem>>, vector<32x8xbf16>
    %61 = arith.truncf %59 : vector<8x128xf32> to vector<8x128xbf16>
    %cst_20 = arith.constant dense<0.000000e+00> : vector<32x128xf32>
    %62 = tpu.matmul %60, %61, %cst_20 {dimension_numbers = #tpu.dot_dimension_numbers<[1], [0], [0], [1], [0, 0, 1, 1], [], []>} : vector<32x8xbf16>, vector<8x128xbf16>, vector<32x128xf32> -> vector<32x128xf32>
    %c0_21 = arith.constant 0 : index
    %c0_22 = arith.constant 0 : index
    %63 = vector.load %arg10[%c0_21, %c0_22] : memref<32x1xf32, #tpu.memory_space<vmem>>, vector<32x1xf32>
    %64 = vector.broadcast %63 : vector<32x1xf32> to vector<32x128xf32>
    %65 = arith.mulf %62, %64 : vector<32x128xf32>
    %c0_23 = arith.constant 0 : index
    %c0_24 = arith.constant 0 : index
    %66 = vector.load %arg11[%c0_23, %c0_24] : memref<32x1xf32, #tpu.memory_space<vmem>>, vector<32x1xf32>
    %67 = vector.broadcast %66 : vector<32x1xf32> to vector<32x128xf32>
    %68 = arith.addf %65, %67 : vector<32x128xf32>
    %69 = arith.addf %68, %0 : vector<32x128xf32>
    %cst_25 = arith.constant 0.000000e+00 : f32
    %70 = vector.broadcast %cst_25 : f32 to vector<32x128xf32>
    %71 = arith.maximumf %69, %70 : vector<32x128xf32>
    %c0_26 = arith.constant 0 : index
    %c0_27 = arith.constant 0 : index
    %72 = vector.load %arg12[%c0_26, %c0_27] : memref<32x128xf32, #tpu.memory_space<vmem>>, vector<32x128xf32>
    tpu.vector_store %arg12[%c0_26, %c0_27], %71 {strides = array<i32>} : memref<32x128xf32, #tpu.memory_space<vmem>>, vector<32x128xf32>,
    return
  }
  func.func @transform_0(%arg0: i32) -> (i32, i32) {
    %c0_i32 = arith.constant 0 : i32
    %c0_i32_0 = arith.constant 0 : i32
    return %c0_i32, %arg0 : i32, i32
  }
  func.func @transform_1(%arg0: i32) -> (i32, i32) {
    %c0_i32 = arith.constant 0 : i32
    %c0_i32_0 = arith.constant 0 : i32
    %c0_i32_1 = arith.constant 0 : i32
    return %c0_i32, %c0_i32_0 : i32, i32
  }
  func.func @transform_2(%arg0: i32) -> (i32, i32) {
    %c0_i32 = arith.constant 0 : i32
    %c0_i32_0 = arith.constant 0 : i32
    %c0_i32_1 = arith.constant 0 : i32
    return %c0_i32, %c0_i32_0 : i32, i32
  }
  func.func @transform_3(%arg0: i32) -> (i32, i32) {
    %c0_i32 = arith.constant 0 : i32
    %c0_i32_0 = arith.constant 0 : i32
    %c0_i32_1 = arith.constant 0 : i32
    return %c0_i32, %c0_i32_0 : i32, i32
  }
  func.func @transform_4(%arg0: i32) -> (i32, i32) {
    %c0_i32 = arith.constant 0 : i32
    %c0_i32_0 = arith.constant 0 : i32
    %c0_i32_1 = arith.constant 0 : i32
    return %c0_i32, %c0_i32_0 : i32, i32
  }
  func.func @transform_5(%arg0: i32) -> (i32, i32) {
    %c0_i32 = arith.constant 0 : i32
    %c0_i32_0 = arith.constant 0 : i32
    %c0_i32_1 = arith.constant 0 : i32
    return %c0_i32, %c0_i32_0 : i32, i32
  }
  func.func @transform_6(%arg0: i32) -> (i32, i32) {
    %c0_i32 = arith.constant 0 : i32
    %c0_i32_0 = arith.constant 0 : i32
    %c0_i32_1 = arith.constant 0 : i32
    return %c0_i32, %c0_i32_0 : i32, i32
  }
  func.func @transform_7(%arg0: i32) -> (i32, i32) {
    %c0_i32 = arith.constant 0 : i32
    %c0_i32_0 = arith.constant 0 : i32
    %c0_i32_1 = arith.constant 0 : i32
    return %c0_i32, %c0_i32_0 : i32, i32
  }
  func.func @transform_8(%arg0: i32) -> (i32, i32) {
    %c0_i32 = arith.constant 0 : i32
    %c0_i32_0 = arith.constant 0 : i32
    %c0_i32_1 = arith.constant 0 : i32
    return %c0_i32, %c0_i32_0 : i32, i32
  }
  func.func @transform_9(%arg0: i32) -> (i32, i32) {
    %c0_i32 = arith.constant 0 : i32
    %c0_i32_0 = arith.constant 0 : i32
    %c0_i32_1 = arith.constant 0 : i32
    return %c0_i32, %c0_i32_0 : i32, i32
  }
  func.func @transform_10(%arg0: i32) -> (i32, i32) {
    %c0_i32 = arith.constant 0 : i32
    %c0_i32_0 = arith.constant 0 : i32
    %c0_i32_1 = arith.constant 0 : i32
    return %c0_i32, %c0_i32_0 : i32, i32
  }
  func.func @transform_11(%arg0: i32) -> (i32, i32) {
    %c0_i32 = arith.constant 0 : i32
    %c0_i32_0 = arith.constant 0 : i32
    return %c0_i32, %arg0 : i32, i32
  }
}

</mosaic_0001>

<llo_original>
// kernel: tpu_custom_call.1
$region0: #{tpu_custom_call.1}
  #allocation0 [shape = 'u32[]', space=smem, size = 0x4, offset = 0x4, fixed_abs, tag = 'smem constant byte address 0x4 - core index']
  #allocation1 [shape = 'u32[72,128]{1,0:T(1,128)}', space=vmem, size = 0x9000, scoped, tag = 'internal scratch']
  %s0 = inlined_call_operand.vmem [shape: f32[32,128], index: 0, kind: input, shape index: {}]
  %s1 = inlined_call_operand.vmem [shape: f32[9,128], index: 1, kind: input, shape index: {}]
  %s2 = inlined_call_operand.vmem [shape: bf16[8,32], index: 2, kind: input, shape index: {}]
  %s3 = inlined_call_operand.vmem [shape: f32[8,1], index: 3, kind: input, shape index: {}]
  %s4 = inlined_call_operand.vmem [shape: f32[8,1], index: 4, kind: input, shape index: {}]
  %s5 = inlined_call_operand.vmem [shape: bf16[8,72], index: 5, kind: input, shape index: {}]
  %s6 = inlined_call_operand.vmem [shape: f32[8,1], index: 6, kind: input, shape index: {}]
  %s7 = inlined_call_operand.vmem [shape: f32[8,1], index: 7, kind: input, shape index: {}]
  %s8 = inlined_call_operand.vmem [shape: bf16[32,8], index: 8, kind: input, shape index: {}]
  %s9 = inlined_call_operand.vmem [shape: f32[32,1], index: 9, kind: input, shape index: {}]
  %s10 = inlined_call_operand.vmem [shape: f32[32,1], index: 10, kind: input, shape index: {}]
  %s11 = inlined_call_operand.hbm [shape: f32[32,128], index: 11, kind: output, shape index: {}]
  %s12 = sld [smem:[#allocation0]]
  $region54: #{tpu_custom_call.1} parent=0
    _
  %s14 = ssub.s32 1, %s12
  %s15 = scalar_select 0, %s14, %s12
  $region1: #{tpu_custom_call.1} parent=0
    #allocation2 [shape = 'u8[16384]{0}', space=vmem, size = 0x4000, scoped, tag = 'output window, operand 0, single buffered']
    #allocation3 [shape = 's32[1]{0}', space=sflag, size = 0x4, scoped, tag = 'scoped memory for tpu_custom_call.1']
    %16 = vsyncpa [#allocation3], 0
    // Predicated region
    $region2: #{tpu_custom_call.1} parent=1 // pred_check
      _
    $region3: #{tpu_custom_call.1} parent=1 // pred_check_branch
      %18 = sbr.rel (0) target = $region5
    $region4: #{tpu_custom_call.1} parent=1 // pred_region
      _
    $region5: #{tpu_custom_call.1} parent=1 // pred_fallthru
      _
    // Predicated region
    $region6: #{tpu_custom_call.1} parent=1 // pred_check
      _
    $region7: #{tpu_custom_call.1} parent=1 // pred_check_branch
      %20 = sbr.rel (0) target = $region9
    $region8: #{tpu_custom_call.1} parent=1 // pred_region
      _
    $region9: #{tpu_custom_call.1} parent=1 // pred_fallthru
      _
    // Predicated region
    $region10: #{tpu_custom_call.1} parent=1 // pred_check
      _
    $region11: #{tpu_custom_call.1} parent=1 // pred_check_branch
      %22 = sbr.rel (0) target = $region13
    $region12: #{tpu_custom_call.1} parent=1 // pred_region
      _
    $region13: #{tpu_custom_call.1} parent=1 // pred_fallthru
      _
    // Predicated region
    $region14: #{tpu_custom_call.1} parent=1 // pred_check
      _
    $region15: #{tpu_custom_call.1} parent=1 // pred_check_branch
      %24 = sbr.rel (0) target = $region17
    $region16: #{tpu_custom_call.1} parent=1 // pred_region
      _
    $region17: #{tpu_custom_call.1} parent=1 // pred_fallthru
      _
    // Predicated region
    $region18: #{tpu_custom_call.1} parent=1 // pred_check
      _
    $region19: #{tpu_custom_call.1} parent=1 // pred_check_branch
      %26 = sbr.rel (0) target = $region21
    $region20: #{tpu_custom_call.1} parent=1 // pred_region
      _
    $region21: #{tpu_custom_call.1} parent=1 // pred_fallthru
      _
    // Predicated region
    $region22: #{tpu_custom_call.1} parent=1 // pred_check
      _
    $region23: #{tpu_custom_call.1} parent=1 // pred_check_branch
      %28 = sbr.rel (0) target = $region25
    $region24: #{tpu_custom_call.1} parent=1 // pred_region
      _
    $region25: #{tpu_custom_call.1} parent=1 // pred_fallthru
      _
    // Predicated region
    $region26: #{tpu_custom_call.1} parent=1 // pred_check
      _
    $region27: #{tpu_custom_call.1} parent=1 // pred_check_branch
      %30 = sbr.rel (0) target = $region29
    $region28: #{tpu_custom_call.1} parent=1 // pred_region
      _
    $region29: #{tpu_custom_call.1} parent=1 // pred_fallthru
      _
    // Predicated region
    $region30: #{tpu_custom_call.1} parent=1 // pred_check
      _
    $region31: #{tpu_custom_call.1} parent=1 // pred_check_branch
      %32 = sbr.rel (0) target = $region33
    $region32: #{tpu_custom_call.1} parent=1 // pred_region
      _
    $region33: #{tpu_custom_call.1} parent=1 // pred_fallthru
      _
    // Predicated region
    $region34: #{tpu_custom_call.1} parent=1 // pred_check
      _
    $region35: #{tpu_custom_call.1} parent=1 // pred_check_branch
      %34 = sbr.rel (0) target = $region37
    $region36: #{tpu_custom_call.1} parent=1 // pred_region
      _
    $region37: #{tpu_custom_call.1} parent=1 // pred_fallthru
      _
    // Predicated region
    $region38: #{tpu_custom_call.1} parent=1 // pred_check
      _
    $region39: #{tpu_custom_call.1} parent=1 // pred_check_branch
      %36 = sbr.rel (0) target = $region41
    $region40: #{tpu_custom_call.1} parent=1 // pred_region
      _
    $region41: #{tpu_custom_call.1} parent=1 // pred_fallthru
      _
    // Predicated region
    $region42: #{tpu_custom_call.1} parent=1 // pred_check
      _
    $region43: #{tpu_custom_call.1} parent=1 // pred_check_branch
      %38 = sbr.rel (0) target = $region45
    $region44: #{tpu_custom_call.1} parent=1 // pred_region
      _
    $region45: #{tpu_custom_call.1} parent=1 // pred_fallthru
      _
    %v40 = vld [vmem:[%s0] sm:$0xff]
    %v41 = vld [vmem:[%s0 + $0x8] sm:$0xff]
    %v42 = vld [vmem:[%s0 + $0x10] sm:$0xff]
    %v43 = vld [vmem:[%s0 + $0x18] sm:$0xff]
    %v44 = vpack.c.bf16 %v41, %v40
    %v45 = vpack.c.bf16 %v43, %v42
    %v46 = vld [vmem:[%s1] sm:$0xff]
    %v47 = vld [vmem:[%s1 + $0x8] sm:$0x1]
    %v48 = vld [vmem:[%s2] sm:$0xf]
    %vm49 = vcmask 261120
    %v51 = vsel %vm49, %v48, 0
    %53 = vmatpush.bf16.msra.mxu0 0
    %54 = vmatpush.bf16.msra.mxu0 0
    %55 = vmatpush.bf16.msra.mxu0 0
    %56 = vmatpush.bf16.msra.mxu0 0
    %57 = vmatpush.bf16.msra.mxu0 0
    %58 = vmatpush.bf16.msra.mxu0 0
    %59 = vmatpush.bf16.msra.mxu0 %v45
    %60 = vmatpush.bf16.msra.mxu0 %v44
    %61 = vmatmul.bf16.gmra.mxu0 %v51
    %v62 = vpop.f32.mrf.mxu0
    %v63 = vadd.f32 0.0, %v62
    %v64 = vpop.f32.mrf.mxu0
    %65 = vdwg.mxu0
    %v66 = vld [vmem:[%s3] sm:$0xff]
    %68 = vset.pattern.permute.xlu0 0
    %69 = vperm.xlu0 %68, %v66
    %v70 = vpop.permute.xlu0 %69
    %v72 = vmul.f32 %v63, %v70
    %v73 = vld [vmem:[%s4] sm:$0xff]
    %75 = vset.pattern.permute.xlu0 0
    %76 = vperm.xlu0 %75, %v73
    %v77 = vpop.permute.xlu0 %76
    %v79 = vadd.f32 %v72, %v77
    %v80 = vmax.f32 %v79, 0.0
    %81 = vrot.lane.b32.xlu0 %v80, 9
    %v82 = vpop.permute.xlu0 %81
    %v83 = vperm.slane %v46, 0
    %v84 = vmul.f32 %v82, %v83
    %85 = vrot.lane.b32.xlu0 %v80, 8
    %v86 = vpop.permute.xlu0 %85
    %v87 = vperm.slane %v46, 1
    %v88 = vmul.f32 %v86, %v87
    %89 = vrot.lane.b32.xlu0 %v80, 7
    %v90 = vpop.permute.xlu0 %89
    %v91 = vperm.slane %v46, 2
    %v92 = vmul.f32 %v90, %v91
    %93 = vrot.lane.b32.xlu0 %v80, 1
    %v94 = vpop.permute.xlu0 %93
    %v95 = vperm.slane %v46, 3
    %v96 = vmul.f32 %v94, %v95
    %v97 = vperm.slane %v46, 4
    %v98 = vmul.f32 %v80, %v97
    %99 = vrot.lane.b32.xlu0 %v80, 127
    %v100 = vpop.permute.xlu0 %99
    %v101 = vperm.slane %v46, 5
    %v102 = vmul.f32 %v100, %v101
    %103 = vrot.lane.b32.xlu0 %v80, 121
    %v104 = vpop.permute.xlu0 %103
    %v105 = vperm.slane %v46, 6
    %v106 = vmul.f32 %v104, %v105
    %107 = vrot.lane.b32.xlu0 %v80, 120
    %v108 = vpop.permute.xlu0 %107
    %v109 = vperm.slane %v46, 7
    %v110 = vmul.f32 %v108, %v109
    %111 = vrot.lane.b32.xlu0 %v80, 119
    %v112 = vpop.permute.xlu0 %111
    %v113 = vperm.slane %v47, 0
    %v114 = vmul.f32 %v112, %v113
    %v115 = vpack.c.bf16 %v88, %v84
    %v116 = vpack.c.bf16 %v96, %v92
    %v117 = vpack.c.bf16 %v102, %v98
    %v118 = vpack.c.bf16 %v110, %v106
    %v119 = vpack.c.bf16 %v114, %v114
    %v120 = vld [vmem:[%s5] sm:$0xf]
    %vm121 = vcmask 588800
    %v123 = vsel %vm121, %v120, 0
    %vm125 = vcmask 1043456
    %v127 = vsel %vm125, %v119, 0
    %129 = vmatpush.bf16.msra.mxu0 0
    %130 = vmatpush.bf16.msra.mxu0 0
    %131 = vmatpush.bf16.msra.mxu0 0
    %132 = vmatpush.bf16.msra.mxu0 %v127
    %133 = vmatpush.bf16.msra.mxu0 %v118
    %134 = vmatpush.bf16.msra.mxu0 %v117
    %135 = vmatpush.bf16.msra.mxu0 %v116
    %136 = vmatpush.bf16.msra.mxu0 %v115
    %137 = vmatmul.bf16.gmra.mxu0 %v123
    %v138 = vpop.f32.mrf.mxu0
    %v139 = vadd.f32 0.0, %v138
    %v140 = vpop.f32.mrf.mxu0
    %141 = vdwg.mxu0
    %v142 = vld [vmem:[%s6] sm:$0xff]
    %144 = vset.pattern.permute.xlu0 0
    %145 = vperm.xlu0 %144, %v142
    %v146 = vpop.permute.xlu0 %145
    %v148 = vmul.f32 %v139, %v146
    %v149 = vld [vmem:[%s7] sm:$0xff]
    %151 = vset.pattern.permute.xlu0 0
    %152 = vperm.xlu0 %151, %v149
    %v153 = vpop.permute.xlu0 %152
    %v155 = vadd.f32 %v148, %v153
    %v156 = vmax.f32 %v155, 0.0
    %v157 = vld [vmem:[%s8] sm:$0xf]
    %v158 = vld [vmem:[%s8 + $0x4] sm:$0xf]
    %v159 = vld [vmem:[%s8 + $0x8] sm:$0xf]
    %v160 = vld [vmem:[%s8 + $0xc] sm:$0xf]
    %v161 = vpack.c.bf16 %v156, %v156
    %v166 = vunpack.c.l.b16 %v157
    %v167 = vunpack.c.l.b16 %v158
    %v168 = vunpack.c.l.b16 %v159
    %v169 = vunpack.c.l.b16 %v160
    %v170 = vpack.c.b16 %v167, %v166
    %v171 = vpack.c.b16 %v169, %v168
    %vm172 = vcmask 64512
    %v174 = vsel %vm172, %v170, 0
    %v177 = vsel %vm172, %v171, 0
    %v180 = vsel %vm125, %v161, 0
    %182 = vmatpush.bf16.msra.mxu0 0
    %183 = vmatpush.bf16.msra.mxu0 0
    %184 = vmatpush.bf16.msra.mxu0 0
    %185 = vmatpush.bf16.msra.mxu0 0
    %186 = vmatpush.bf16.msra.mxu0 0
    %187 = vmatpush.bf16.msra.mxu0 0
    %188 = vmatpush.bf16.msra.mxu0 0
    %189 = vmatpush.bf16.msra.mxu0 %v180
    %190 = vmatmul.bf16.gmra.mxu0 %v174
    %v191 = vpop.f32.mrf.mxu0
    %v192 = vadd.f32 0.0, %v191
    %v193 = vpop.f32.mrf.mxu0
    %v194 = vadd.f32 0.0, %v193
    %195 = vmatmul.bf16.gmra.mxu0 %v177
    %v196 = vpop.f32.mrf.mxu0
    %v197 = vadd.f32 0.0, %v196
    %v198 = vpop.f32.mrf.mxu0
    %v199 = vadd.f32 0.0, %v198
    %200 = vdwg.mxu0
    %v201 = vld [vmem:[%s9] sm:$0xff]
    %v202 = vld [vmem:[%s9 + $0x8] sm:$0xff]
    %v203 = vld [vmem:[%s9 + $0x10] sm:$0xff]
    %v204 = vld [vmem:[%s9 + $0x18] sm:$0xff]
    %206 = vset.pattern.permute.xlu0 0
    %207 = vperm.xlu0 %206, %v201
    %v208 = vpop.permute.xlu0 %207
    %211 = vset.pattern.permute.xlu0 0
    %212 = vperm.xlu0 %211, %v202
    %v213 = vpop.permute.xlu0 %212
    %216 = vset.pattern.permute.xlu0 0
    %217 = vperm.xlu0 %216, %v203
    %v218 = vpop.permute.xlu0 %217
    %221 = vset.pattern.permute.xlu0 0
    %222 = vperm.xlu0 %221, %v204
    %v223 = vpop.permute.xlu0 %222
    %v225 = vmul.f32 %v192, %v208
    %v226 = vmul.f32 %v194, %v213
    %v227 = vmul.f32 %v197, %v218
    %v228 = vmul.f32 %v199, %v223
    %v229 = vld [vmem:[%s10] sm:$0xff]
    %v230 = vld [vmem:[%s10 + $0x8] sm:$0xff]
    %v231 = vld [vmem:[%s10 + $0x10] sm:$0xff]
    %v232 = vld [vmem:[%s10 + $0x18] sm:$0xff]
    %234 = vset.pattern.permute.xlu0 0
    %235 = vperm.xlu0 %234, %v229
    %v236 = vpop.permute.xlu0 %235
    %239 = vset.pattern.permute.xlu0 0
    %240 = vperm.xlu0 %239, %v230
    %v241 = vpop.permute.xlu0 %240
    %244 = vset.pattern.permute.xlu0 0
    %245 = vperm.xlu0 %244, %v231
    %v246 = vpop.permute.xlu0 %245
    %249 = vset.pattern.permute.xlu0 0
    %250 = vperm.xlu0 %249, %v232
    %v251 = vpop.permute.xlu0 %250
    %v253 = vadd.f32 %v225, %v236
    %v254 = vadd.f32 %v226, %v241
    %v255 = vadd.f32 %v227, %v246
    %v256 = vadd.f32 %v228, %v251
    %v257 = vadd.f32 %v253, %v40
    %v258 = vadd.f32 %v254, %v41
    %v259 = vadd.f32 %v255, %v42
    %v260 = vadd.f32 %v256, %v43
    %v261 = vmax.f32 %v257, 0.0
    %v262 = vmax.f32 %v258, 0.0
    %v263 = vmax.f32 %v259, 0.0
    %v264 = vmax.f32 %v260, 0.0
    %265 = vst [vmem:[#allocation2] sm:$0xff] %v261
    %266 = vst [vmem:[#allocation2 + $0x8] sm:$0xff] %v262
    %267 = vst [vmem:[#allocation2 + $0x10] sm:$0xff] %v263
    %268 = vst [vmem:[#allocation2 + $0x18] sm:$0xff] %v264
    // Predicated region
    $region46: #{tpu_custom_call.1} parent=1 // pred_check
      _
    $region47: #{tpu_custom_call.1} parent=1 // pred_check_branch
      %270 = sbr.rel (0) target = $region49
    $region48: #{tpu_custom_call.1} parent=1 // pred_region
      %272 = vsyncadd [#allocation3], 0
      %s273 = sshll.u32 [#allocation2], 4
      %s274 = int_to_ptr.vmem [resolvable:$true] %s273
      %s275 = sshll.u32 %s11, 4
      %s276 = int_to_ptr.hbm [resolvable:$true] %s275
      %281 = dma.vmem_to_hbm [thread:$0]  %s274, 512, %s276, [#allocation3], 128, 128, 8
    $region49: #{tpu_custom_call.1} parent=1 // pred_fallthru
      _
    // Predicated region
    $region50: #{tpu_custom_call.1} parent=1 // pred_check
      _
    $region51: #{tpu_custom_call.1} parent=1 // pred_check_branch
      %283 = sbr.rel (0) target = $region53
    $region52: #{tpu_custom_call.1} parent=1 // pred_region
      %285 = dma.done [#allocation3], 512
    $region53: #{tpu_custom_call.1} parent=1 // pred_fallthru
      _
    %286 = vsyncpa [#allocation3], 1

</llo_original>
